<compile_context>
chip_gen: v5e
topology: v5e:2x2
jax: 0.10.0
libtpu: 0.0.40
codegen_flags: <defaults>
</compile_context>

<pallas_src>
import jax
import jax.numpy as jnp
from jax.experimental import pallas as pl
from jax.experimental.pallas import tpu as pltpu

_LN_EPS = 1e-6
_NEG_SLOPE = 0.2


def _round_up(n, m):
    return ((n + m - 1) // m) * m


def _sublane(dtype):
    return {4: 8, 2: 16, 1: 32}.get(jnp.dtype(dtype).itemsize, 8)


def _physical_vmem_bytes():
    try:
        info = pltpu.get_tpu_info()
        for attr in ("vmem_capacity_bytes", "vmem_bytes", "vmem_size_bytes"):
            v = getattr(info, attr, None)
            if v:
                return int(v)
    except Exception:
        pass
    return 64 * 1024 * 1024  # conservative default (v7x per-TC VMEM)


def _dot_f32(a, b):
    # f32 operands -> exact multi-pass MXU matmul; bf16 operands are already
    # single-pass with f32 accumulation via preferred_element_type.
    prec = jax.lax.Precision.HIGHEST if a.dtype == jnp.float32 else None
    return jnp.dot(a, b, preferred_element_type=jnp.float32, precision=prec)


def _layernorm_f32(x_ref, g_ref, be_ref):
    # PyTorch LayerNorm semantics: unbiased std, eps added to std.
    x = x_ref[...].astype(jnp.float32)
    mean = jnp.mean(x, axis=-1, keepdims=True)
    d = x - mean
    var = jnp.sum(d * d, axis=-1, keepdims=True) / (x.shape[-1] - 1)
    inv = pl.reciprocal(jnp.sqrt(var) + _LN_EPS, approx=False)  # EUP slot
    xn = g_ref[...].astype(jnp.float32) * d * inv + be_ref[...].astype(jnp.float32)
    return x, xn


def _ffn_kernel_resident(x_ref, g_ref, be_ref, w1_ref, b1_ref, w2_ref, b2_ref,
                         o_ref):
    # d_ff fully resident (K == 1): LN -> dot -> leaky_relu -> dot -> +b2 +x.
    x, xn = _layernorm_f32(x_ref, g_ref, be_ref)
    h = _dot_f32(xn.astype(w1_ref.dtype), w1_ref[...])
    h = h + b1_ref[...].astype(jnp.float32)
    h = jnp.maximum(h, _NEG_SLOPE * h)              # leaky_relu, slope 0.2
    # (inner dropout = identity in eval mode)
    out = _dot_f32(h.astype(w2_ref.dtype), w2_ref[...])
    # (outer dropout = identity in eval mode) + residual connection
    out = out + b2_ref[...].astype(jnp.float32) + x
    o_ref[...] = out.astype(o_ref.dtype)


def _ffn_kernel_chunked(x_ref, g_ref, be_ref, w1_ref, b1_ref, w2_ref, b2_ref,
                        o_ref, xn_ref, acc_ref):
    # d_ff streamed in chunks over grid axis k; f32 VMEM accumulator.
    k = pl.program_id(1)

    @pl.when(k == 0)
    def _():
        _, xn = _layernorm_f32(x_ref, g_ref, be_ref)
        xn_ref[...] = xn.astype(xn_ref.dtype)
        acc_ref[...] = jnp.zeros_like(acc_ref)

    h = _dot_f32(xn_ref[...], w1_ref[...])
    h = h + b1_ref[...].astype(jnp.float32)
    h = jnp.maximum(h, _NEG_SLOPE * h)
    acc_ref[...] += _dot_f32(h.astype(w2_ref.dtype), w2_ref[...])

    @pl.when(k == pl.num_programs(1) - 1)
    def _():
        out = (acc_ref[...] + b2_ref[...].astype(jnp.float32)
               + x_ref[...].astype(jnp.float32))
        o_ref[...] = out.astype(o_ref.dtype)


def decoder_ffn_sublayer(x, gamma, beta, w1, b1, w2, b2, *,
                         mxu_dtype=None, max_ff_chunk=None):
    """x: [B, S, d_model]; gamma/beta/b2: [d_model]; w1: [d_model, d_ff];
    b1: [d_ff]; w2: [d_ff, d_model].

    mxu_dtype: optional (e.g. jnp.bfloat16) -- cast the matmul operands so the
      MXU runs at bf16 rate with f32 accumulation (precision tradeoff, opt-in).
    max_ff_chunk: optional cap on the d_ff chunk size (testing / tuning)."""
    B, S, d_model = x.shape
    d_ff = w1.shape[1]
    M = B * S

    if mxu_dtype is not None and w1.dtype != jnp.dtype(mxu_dtype):
        w1 = w1.astype(mxu_dtype)
        w2 = w2.astype(mxu_dtype)

    x_isz = jnp.dtype(x.dtype).itemsize
    w_isz = jnp.dtype(w1.dtype).itemsize

    # ---------------- M tiling (dtype-aware sublane rounding) ----------------
    TILE_M = 256
    sub = _sublane(x.dtype)
    if M <= sub:
        tm = sub
    elif M <= 2 * TILE_M:
        # >= 2 M tiles so both v7x TensorCores get work on the "parallel" axis.
        tm = _round_up(-(-M // 2), sub)
    elif M % TILE_M == 0:
        tm = TILE_M
    elif M % 128 == 0:
        tm = 128                      # divides M -> skip the activation pad op
    else:
        tm = TILE_M
    M_p = _round_up(M, tm)
    n_m = M_p // tm

    # -------- d_ff chunking from a generation-aware VMEM budget --------
    phys_vmem = _physical_vmem_bytes()
    limit_cap = int(phys_vmem * 0.85)           # ~108 MiB v5e/v6e, ~54 MiB v7x
    fixed = (2 * 2 * tm * d_model * x_isz                 # x + out, 2-buffered
             + 6 * 8 * _round_up(d_model, 128) * 4        # gamma/beta/b2 bufs
             + tm * d_model * (w_isz + 4))                # xn + acc scratch
    budget = limit_cap - fixed - (4 << 20)                # headroom
    # per unit of tf: 2-buffered w1 column + w2 row (+ b1) + f32 (tm,tf) temps
    per_ff = 2 * (2 * d_model + 1) * w_isz + 2 * tm * 4
    tf_cap = max(128, (max(budget, 0) // per_ff) // 128 * 128)
    if max_ff_chunk is not None:
        tf_cap = min(tf_cap, max(128, max_ff_chunk))
    tf = d_ff if d_ff <= tf_cap else tf_cap
    d_ff_p = _round_up(d_ff, tf)
    n_k = d_ff_p // tf

    # ---------------- padding (only when unavoidable) ----------------
    x2 = x.reshape(M, d_model)
    if M_p != M:
        x2 = jnp.pad(x2, ((0, M_p - M), (0, 0)))
    if d_ff_p != d_ff:
        # zero-padded d_ff columns/rows contribute exactly zero to the output
        w1 = jnp.pad(w1, ((0, 0), (0, d_ff_p - d_ff)))
        b1 = jnp.pad(b1, (0, d_ff_p - d_ff))
        w2 = jnp.pad(w2, ((0, d_ff_p - d_ff), (0, 0)))

    g2 = gamma.reshape(1, d_model)
    be2 = beta.reshape(1, d_model)
    b1_2 = b1.reshape(1, d_ff_p)
    b2_2 = b2.reshape(1, d_model)

    # ---------------- VMEM limit / cost estimate ----------------
    vmem_needed = fixed + tf * per_ff
    vmem_limit = int(min(max(2 * vmem_needed, 32 << 20), limit_cap))

    weight_hbm = (2 * d_model * d_ff_p + d_ff_p) * w_isz
    if n_k > 1:                 # weight chunks are re-fetched for every M tile
        weight_hbm *= n_m
    cost = pl.CostEstimate(
        flops=4 * M_p * d_model * d_ff_p,
        transcendentals=2 * M_p,            # sqrt + reciprocal per row
        bytes_accessed=int(2 * M_p * d_model * x_isz + weight_hbm
                           + 3 * d_model * 4),
    )

    out_shape = jax.ShapeDtypeStruct((M_p, d_model), x.dtype)

    if n_k == 1:
        grid = (n_m,)
        in_specs = [
            pl.BlockSpec((tm, d_model), lambda i: (i, 0)),       # x tile
            pl.BlockSpec((1, d_model), lambda i: (0, 0)),        # gamma
            pl.BlockSpec((1, d_model), lambda i: (0, 0)),        # beta
            pl.BlockSpec((d_model, d_ff_p), lambda i: (0, 0)),   # w1 (resident)
            pl.BlockSpec((1, d_ff_p), lambda i: (0, 0)),         # b1
            pl.BlockSpec((d_ff_p, d_model), lambda i: (0, 0)),   # w2 (resident)
            pl.BlockSpec((1, d_model), lambda i: (0, 0)),        # b2
        ]
        out_specs = pl.BlockSpec((tm, d_model), lambda i: (i, 0))
        scratch_shapes = []
        kernel = _ffn_kernel_resident
        dims = ("parallel",)
    else:
        grid = (n_m, n_k)
        in_specs = [
            pl.BlockSpec((tm, d_model), lambda i, k: (i, 0)),    # x tile
            pl.BlockSpec((1, d_model), lambda i, k: (0, 0)),     # gamma
            pl.BlockSpec((1, d_model), lambda i, k: (0, 0)),     # beta
            pl.BlockSpec((d_model, tf), lambda i, k: (0, k)),    # w1 chunk
            pl.BlockSpec((1, tf), lambda i, k: (0, k)),          # b1 chunk
            pl.BlockSpec((tf, d_model), lambda i, k: (k, 0)),    # w2 chunk
            pl.BlockSpec((1, d_model), lambda i, k: (0, 0)),     # b2
        ]
        out_specs = pl.BlockSpec((tm, d_model), lambda i, k: (i, 0))
        scratch_shapes = [
            pltpu.VMEM((tm, d_model), w1.dtype),      # normalized x (operand dt)
            pltpu.VMEM((tm, d_model), jnp.float32),   # f32 accumulator
        ]
        kernel = _ffn_kernel_chunked
        dims = ("parallel", "arbitrary")

    out = pl.pallas_call(
        kernel,
        out_shape=out_shape,
        grid_spec=pltpu.PrefetchScalarGridSpec(
            num_scalar_prefetch=0,
            grid=grid,
            in_specs=in_specs,
            out_specs=out_specs,
            scratch_shapes=scratch_shapes,
        ),
        compiler_params=pltpu.CompilerParams(
            dimension_semantics=dims,
            vmem_limit_bytes=vmem_limit,
        ),
        cost_estimate=cost,
    )(x2, g2, be2, w1, b1_2, w2, b2_2)

    if M_p != M:
        out = out[:M]
    return out.reshape(B, S, d_model)


def reference_sublayer(x, gamma, beta, w1, b1, w2, b2, eps=_LN_EPS):
    xf = x.astype(jnp.float32)
    mean = xf.mean(-1, keepdims=True)
    var = jnp.sum((xf - mean) ** 2, -1, keepdims=True) / (x.shape[-1] - 1)
    std = jnp.sqrt(var)
    xn = (gamma.astype(jnp.float32) * (xf - mean) / (std + eps)
          + beta.astype(jnp.float32))
    h = jnp.einsum("bsd,df->bsf", xn, w1.astype(jnp.float32),
                   precision=jax.lax.Precision.HIGHEST) + b1.astype(jnp.float32)
    h = jnp.maximum(h, _NEG_SLOPE * h)
    o = jnp.einsum("bsf,fd->bsd", h, w2.astype(jnp.float32),
                   precision=jax.lax.Precision.HIGHEST) + b2.astype(jnp.float32)
    return (xf + o).astype(x.dtype)


def _make_inputs(key, B, S, d_model, d_ff):
    kx, kg, kb, k1, kb1, k2, kb2 = jax.random.split(key, 7)
    x = jax.random.normal(kx, (B, S, d_model), dtype=jnp.float32)
    gamma = (jnp.ones((d_model,), jnp.float32)
             + 0.1 * jax.random.normal(kg, (d_model,), dtype=jnp.float32))
    beta = 0.1 * jax.random.normal(kb, (d_model,), dtype=jnp.float32)
    # nn.Linear weight shapes are (out, in); store transposed for the kernel.
    w1 = (jax.random.normal(k1, (d_ff, d_model), dtype=jnp.float32) * 0.05).T
    b1 = jax.random.normal(kb1, (d_ff,), dtype=jnp.float32) * 0.05
    w2 = (jax.random.normal(k2, (d_model, d_ff), dtype=jnp.float32) * 0.05).T
    b2 = jax.random.normal(kb2, (d_model,), dtype=jnp.float32) * 0.05
    return x, gamma, beta, w1, b1, w2, b2


if __name__ == "__main__":
    key = jax.random.PRNGKey(0)
    B, S, d_model = 2, 8, 32

    # 1) K == 1 path (d_ff fully resident), f32 MXU operands, tight tolerance.
    args = _make_inputs(key, B, S, d_model, 64)
    out = jax.block_until_ready(decoder_ffn_sublayer(*args))
    ref = reference_sublayer(*args)
    assert out.shape == (B, S, d_model)
    assert jnp.allclose(out, ref, atol=1e-4, rtol=1e-4), "K=1 path mismatch"

    # 2) Chunked d_ff reduction path (K > 1, forced via max_ff_chunk), f32.
    args2 = _make_inputs(key, B, S, d_model, 256)
    out2 = jax.block_until_ready(
        decoder_ffn_sublayer(*args2, max_ff_chunk=128))
    ref2 = reference_sublayer(*args2)
    assert out2.shape == (B, S, d_model)
    assert jnp.allclose(out2, ref2, atol=1e-4, rtol=1e-4), "chunked path mismatch"

    # 3) Opt-in bf16 MXU operands (precision tradeoff) -- loose tolerance.
    out3 = jax.block_until_ready(
        decoder_ffn_sublayer(*args, mxu_dtype=jnp.bfloat16))
    assert jnp.allclose(out3, ref, atol=5e-2, rtol=5e-2), "bf16 path mismatch"

    print("KERNEL_OK")
</pallas_src>

<mosaic_0001>
module attributes {stable_mosaic.version = 11 : i64} {
  func.func @_ffn_kernel_resident(%arg0: i32, %arg1: memref<8x32xf32, #tpu.memory_space<vmem>>, %arg2: memref<1x32xf32, #tpu.memory_space<vmem>>, %arg3: memref<1x32xf32, #tpu.memory_space<vmem>>, %arg4: memref<32x64xf32, #tpu.memory_space<vmem>>, %arg5: memref<1x64xf32, #tpu.memory_space<vmem>>, %arg6: memref<64x32xf32, #tpu.memory_space<vmem>>, %arg7: memref<1x32xf32, #tpu.memory_space<vmem>>, %arg8: memref<8x32xf32, #tpu.memory_space<vmem>>) attributes {dimension_semantics = [#tpu.dimension_semantics<parallel>], iteration_bounds = array<i64: 2>, scalar_prefetch = 0 : i64, scratch_operands = 0 : i64, tpu.core_type = #tpu.core_type<tc>, window_params = [{transform_indices = @transform_0, window_bounds = array<i64: 8, 32>}, {pipeline_mode = #tpu.pipeline_mode<synchronous>, transform_indices = @transform_1, window_bounds = array<i64: 1, 32>}, {pipeline_mode = #tpu.pipeline_mode<synchronous>, transform_indices = @transform_2, window_bounds = array<i64: 1, 32>}, {pipeline_mode = #tpu.pipeline_mode<synchronous>, transform_indices = @transform_3, window_bounds = array<i64: 32, 64>}, {pipeline_mode = #tpu.pipeline_mode<synchronous>, transform_indices = @transform_4, window_bounds = array<i64: 1, 64>}, {pipeline_mode = #tpu.pipeline_mode<synchronous>, transform_indices = @transform_5, window_bounds = array<i64: 64, 32>}, {pipeline_mode = #tpu.pipeline_mode<synchronous>, transform_indices = @transform_6, window_bounds = array<i64: 1, 32>}, {transform_indices = @transform_7, window_bounds = array<i64: 8, 32>}]} {
    %c0 = arith.constant 0 : index
    %c0_0 = arith.constant 0 : index
    %0 = vector.load %arg1[%c0, %c0_0] : memref<8x32xf32, #tpu.memory_space<vmem>>, vector<8x32xf32>
    %cst = arith.constant dense<0.000000e+00> : vector<8xf32>
    %1 = vector.multi_reduction <add>, %0, %cst [1] : vector<8x32xf32> to vector<8xf32>
    %2 = vector.shape_cast %1 : vector<8xf32> to vector<8x1xf32>
    %cst_1 = arith.constant 3.200000e+01 : f32
    %3 = vector.broadcast %cst_1 : f32 to vector<8x1xf32>
    %4 = arith.divf %2, %3 : vector<8x1xf32>
    %5 = vector.broadcast %4 : vector<8x1xf32> to vector<8x32xf32>
    %6 = arith.subf %0, %5 : vector<8x32xf32>
    %7 = arith.mulf %6, %6 : vector<8x32xf32>
    %cst_2 = arith.constant dense<0.000000e+00> : vector<8xf32>
    %8 = vector.multi_reduction <add>, %7, %cst_2 [1] : vector<8x32xf32> to vector<8xf32>
    %9 = vector.shape_cast %8 : vector<8xf32> to vector<8x1xf32>
    %cst_3 = arith.constant 3.100000e+01 : f32
    %10 = vector.broadcast %cst_3 : f32 to vector<8x1xf32>
    %11 = arith.divf %9, %10 : vector<8x1xf32>
    %12 = math.sqrt %11 : vector<8x1xf32>
    %cst_4 = arith.constant 9.99999997E-7 : f32
    %13 = vector.broadcast %cst_4 : f32 to vector<8x1xf32>
    %14 = arith.addf %12, %13 : vector<8x1xf32>
    %15 = tpu.reciprocal %14 : vector<8x1xf32> -> vector<8x1xf32>
    %c0_5 = arith.constant 0 : index
    %c0_6 = arith.constant 0 : index
    %16 = vector.load %arg2[%c0_5, %c0_6] : memref<1x32xf32, #tpu.memory_space<vmem>>, vector<1x32xf32>
    %17 = vector.broadcast %16 : vector<1x32xf32> to vector<8x32xf32>
    %18 = arith.mulf %17, %6 : vector<8x32xf32>
    %19 = vector.broadcast %15 : vector<8x1xf32> to vector<8x32xf32>
    %20 = arith.mulf %18, %19 : vector<8x32xf32>
    %c0_7 = arith.constant 0 : index
    %c0_8 = arith.constant 0 : index
    %21 = vector.load %arg3[%c0_7, %c0_8] : memref<1x32xf32, #tpu.memory_space<vmem>>, vector<1x32xf32>
    %22 = vector.broadcast %21 : vector<1x32xf32> to vector<8x32xf32>
    %23 = arith.addf %20, %22 : vector<8x32xf32>
    %c0_9 = arith.constant 0 : index
    %c0_10 = arith.constant 0 : index
    %24 = vector.load %arg4[%c0_9, %c0_10] : memref<32x64xf32, #tpu.memory_space<vmem>>, vector<32x64xf32>
    %cst_11 = arith.constant dense<0.000000e+00> : vector<8x64xf32>
    %25 = tpu.matmul %23, %24, %cst_11 {dimension_numbers = #tpu.dot_dimension_numbers<[1], [0], [0], [1], [0, 0, 1, 1], [], []>, precision = #tpu.contract_precision<fp32>} : vector<8x32xf32>, vector<32x64xf32>, vector<8x64xf32> -> vector<8x64xf32>
    %c0_12 = arith.constant 0 : index
    %c0_13 = arith.constant 0 : index
    %26 = vector.load %arg5[%c0_12, %c0_13] : memref<1x64xf32, #tpu.memory_space<vmem>>, vector<1x64xf32>
    %27 = vector.broadcast %26 : vector<1x64xf32> to vector<8x64xf32>
    %28 = arith.addf %25, %27 : vector<8x64xf32>
    %cst_14 = arith.constant 2.000000e-01 : f32
    %29 = vector.broadcast %cst_14 : f32 to vector<8x64xf32>
    %30 = arith.mulf %29, %28 : vector<8x64xf32>
    %31 = arith.maximumf %28, %30 : vector<8x64xf32>
    %c0_15 = arith.constant 0 : index
    %c0_16 = arith.constant 0 : index
    %32 = vector.load %arg6[%c0_15, %c0_16] : memref<64x32xf32, #tpu.memory_space<vmem>>, vector<64x32xf32>
    %cst_17 = arith.constant dense<0.000000e+00> : vector<8x32xf32>
    %33 = tpu.matmul %31, %32, %cst_17 {dimension_numbers = #tpu.dot_dimension_numbers<[1], [0], [0], [1], [0, 0, 1, 1], [], []>, precision = #tpu.contract_precision<fp32>} : vector<8x64xf32>, vector<64x32xf32>, vector<8x32xf32> -> vector<8x32xf32>
    %c0_18 = arith.constant 0 : index
    %c0_19 = arith.constant 0 : index
    %34 = vector.load %arg7[%c0_18, %c0_19] : memref<1x32xf32, #tpu.memory_space<vmem>>, vector<1x32xf32>
    %35 = vector.broadcast %34 : vector<1x32xf32> to vector<8x32xf32>
    %36 = arith.addf %33, %35 : vector<8x32xf32>
    %37 = arith.addf %36, %0 : vector<8x32xf32>
    %c0_20 = arith.constant 0 : index
    %c0_21 = arith.constant 0 : index
    %38 = vector.load %arg8[%c0_20, %c0_21] : memref<8x32xf32, #tpu.memory_space<vmem>>, vector<8x32xf32>
    tpu.vector_store %arg8[%c0_20, %c0_21], %37 {strides = array<i32>} : memref<8x32xf32, #tpu.memory_space<vmem>>, vector<8x32xf32>,
    return
  }
  func.func @transform_0(%arg0: i32) -> (i32, i32) {
    %c0_i32 = arith.constant 0 : i32
    %c0_i32_0 = arith.constant 0 : i32
    return %arg0, %c0_i32 : i32, i32
  }
  func.func @transform_1(%arg0: i32) -> (i32, i32) {
    %c0_i32 = arith.constant 0 : i32
    %c0_i32_0 = arith.constant 0 : i32
    %c0_i32_1 = arith.constant 0 : i32
    return %c0_i32, %c0_i32_0 : i32, i32
  }
  func.func @transform_2(%arg0: i32) -> (i32, i32) {
    %c0_i32 = arith.constant 0 : i32
    %c0_i32_0 = arith.constant 0 : i32
    %c0_i32_1 = arith.constant 0 : i32
    return %c0_i32, %c0_i32_0 : i32, i32
  }
  func.func @transform_3(%arg0: i32) -> (i32, i32) {
    %c0_i32 = arith.constant 0 : i32
    %c0_i32_0 = arith.constant 0 : i32
    %c0_i32_1 = arith.constant 0 : i32
    return %c0_i32, %c0_i32_0 : i32, i32
  }
  func.func @transform_4(%arg0: i32) -> (i32, i32) {
    %c0_i32 = arith.constant 0 : i32
    %c0_i32_0 = arith.constant 0 : i32
    %c0_i32_1 = arith.constant 0 : i32
    return %c0_i32, %c0_i32_0 : i32, i32
  }
  func.func @transform_5(%arg0: i32) -> (i32, i32) {
    %c0_i32 = arith.constant 0 : i32
    %c0_i32_0 = arith.constant 0 : i32
    %c0_i32_1 = arith.constant 0 : i32
    return %c0_i32, %c0_i32_0 : i32, i32
  }
  func.func @transform_6(%arg0: i32) -> (i32, i32) {
    %c0_i32 = arith.constant 0 : i32
    %c0_i32_0 = arith.constant 0 : i32
    %c0_i32_1 = arith.constant 0 : i32
    return %c0_i32, %c0_i32_0 : i32, i32
  }
  func.func @transform_7(%arg0: i32) -> (i32, i32) {
    %c0_i32 = arith.constant 0 : i32
    %c0_i32_0 = arith.constant 0 : i32
    return %arg0, %c0_i32 : i32, i32
  }
}

</mosaic_0001>

<llo_original>
// kernel: tpu_custom_call.1
$region0: #{tpu_custom_call.1}
  #allocation0 [shape = 'u32[]', space=smem, size = 0x4, offset = 0x4, fixed_abs, tag = 'smem constant byte address 0x4 - core index']
  #allocation1 [shape = 'u32[72,128]{1,0:T(1,128)}', space=vmem, size = 0x9000, scoped, tag = 'internal scratch']
  %s0 = inlined_call_operand.vmem [shape: f32[16,32], index: 0, kind: input, shape index: {}]
  %s1 = inlined_call_operand.vmem [shape: f32[1,32], index: 1, kind: input, shape index: {}]
  %s2 = inlined_call_operand.vmem [shape: f32[1,32], index: 2, kind: input, shape index: {}]
  %s3 = inlined_call_operand.vmem [shape: f32[32,64], index: 3, kind: input, shape index: {}]
  %s4 = inlined_call_operand.vmem [shape: f32[1,64], index: 4, kind: input, shape index: {}]
  %s5 = inlined_call_operand.vmem [shape: f32[64,32], index: 5, kind: input, shape index: {}]
  %s6 = inlined_call_operand.vmem [shape: f32[1,32], index: 6, kind: input, shape index: {}]
  %s7 = inlined_call_operand.hbm [shape: f32[16,32], index: 7, kind: output, shape index: {}]
  %s8 = sld [smem:[#allocation0]]
  $region61: #{tpu_custom_call.1} parent=0
    _
  %s10 = ssub.s32 1, %s8
  %s11 = scalar_select 0, %s10, %s8
  $region1: #{tpu_custom_call.1} parent=0
    #allocation2 [shape = 'u8[8192]{0}', space=vmem, size = 0x2000, scoped, tag = 'output window, operand 0']
    #allocation3 [shape = 's32[2]{0}', space=sflag, size = 0x8, scoped, tag = 'scoped memory for tpu_custom_call.1']
    %12 = vsyncpa [#allocation3], 0
    %s13 = scalar_lea.sflag [#allocation3], 1
    %14 = vsyncpa %s13, 0
    loop: start=0, step=1, limit=4
    $region2: #{tpu_custom_call.1} parent=1 // loop_pre_header
      _
    $region3: #{tpu_custom_call.1} parent=1 // loop_header
      %s16 = sphi 0, %s20
      %p17 = scmp.ge.s32.totalorder %s16, 4
      %s26 = sphi 0, %s28
      %s29 = sphi 0, %s26
      %s30 = sphi 0, %s29
      %s46 = sphi 0, %s30
      %s50 = sphi 0, %s50
      %s52 = sphi 0, %s50
      %s53 = sphi 0, %s52
      %s67 = sphi 0, %s53
      %s71 = sphi 0, %s71
      %s73 = sphi 0, %s71
      %s74 = sphi 0, %s73
      %s88 = sphi 0, %s74
      %s92 = sphi 0, %s92
      %s94 = sphi 0, %s92
      %s95 = sphi 0, %s94
      %s109 = sphi 0, %s95
      %s113 = sphi 0, %s113
      %s115 = sphi 0, %s113
      %s116 = sphi 0, %s115
      %s130 = sphi 0, %s116
      %s134 = sphi 0, %s134
      %s136 = sphi 0, %s134
      %s137 = sphi 0, %s136
      %s151 = sphi 0, %s137
      %s155 = sphi 0, %s155
      %s157 = sphi 0, %s155
      %s158 = sphi 0, %s157
      %s172 = sphi 0, %s158
      %s178 = sphi 0, %s180
      %s181 = sphi 0, %s178
      %s182 = sphi 0, %s181
      %s198 = sphi 0, %s182
    $region4: #{tpu_custom_call.1} parent=1 // loop_header_branch
      %19 = sbr.rel (%p17) target = $region8
    $region5: #{tpu_custom_call.1} parent=1 // loop_body
      %s21 = ssub.s32 %s16, 1
      %s22 = ssub.s32 %s16, 2
      %s23 = sadd.s32 %s16, 1
      %s24 = ssub.s32 %s16, %s23
      %p25 = scmp.eq.s32.totalorder %s24, 0
      %s27 = sadd.s32 %s26, 1
      %s28 = scalar_select %p25, %s26, %s27
      %p31 = pneg %p25
      %p32 = scmp.eq.s32.totalorder %s16, 1
      %p33 = por %p31, %p32
      %p34 = scmp.ne.s32.totalorder %s26, %s29
      %p35 = scmp.eq.s32.totalorder %s16, 0
      %p36 = por %p34, %p35
      %p37 = scmp.ne.s32.totalorder %s26, %s29
      %p38 = scmp.eq.s32.totalorder %s21, 1
      %p39 = por %p37, %p38
      %p40 = scmp.ne.s32.totalorder %s29, %s30
      %p41 = scmp.eq.s32.totalorder %s21, 0
      %p42 = por %p40, %p41
      %p43 = scmp.ne.s32.totalorder %s29, %s30
      %p44 = scmp.eq.s32.totalorder %s22, 1
      %p45 = por %p43, %p44
      %p47 = scmp.ne.s32.totalorder %s30, %s46
      %p48 = scmp.eq.s32.totalorder %s22, 0
      %p49 = por %p47, %p48
      %s51 = sadd.s32 %s50, 1
      %p54 = scmp.eq.s32.totalorder %s16, 1
      %p55 = scmp.ne.s32.totalorder %s50, %s52
      %p56 = scmp.eq.s32.totalorder %s16, 0
      %p57 = por %p55, %p56
      %p58 = scmp.ne.s32.totalorder %s50, %s52
      %p59 = scmp.eq.s32.totalorder %s21, 1
      %p60 = por %p58, %p59
      %p61 = scmp.ne.s32.totalorder %s52, %s53
      %p62 = scmp.eq.s32.totalorder %s21, 0
      %p63 = por %p61, %p62
      %p64 = scmp.ne.s32.totalorder %s52, %s53
      %p65 = scmp.eq.s32.totalorder %s22, 1
      %p66 = por %p64, %p65
      %p68 = scmp.ne.s32.totalorder %s53, %s67
      %p69 = scmp.eq.s32.totalorder %s22, 0
      %p70 = por %p68, %p69
      %s72 = sadd.s32 %s71, 1
      %p75 = scmp.eq.s32.totalorder %s16, 1
      %p76 = scmp.ne.s32.totalorder %s71, %s73
      %p77 = scmp.eq.s32.totalorder %s16, 0
      %p78 = por %p76, %p77
      %p79 = scmp.ne.s32.totalorder %s71, %s73
      %p80 = scmp.eq.s32.totalorder %s21, 1
      %p81 = por %p79, %p80
      %p82 = scmp.ne.s32.totalorder %s73, %s74
      %p83 = scmp.eq.s32.totalorder %s21, 0
      %p84 = por %p82, %p83
      %p85 = scmp.ne.s32.totalorder %s73, %s74
      %p86 = scmp.eq.s32.totalorder %s22, 1
      %p87 = por %p85, %p86
      %p89 = scmp.ne.s32.totalorder %s74, %s88
      %p90 = scmp.eq.s32.totalorder %s22, 0
      %p91 = por %p89, %p90
      %s93 = sadd.s32 %s92, 1
      %p96 = scmp.eq.s32.totalorder %s16, 1
      %p97 = scmp.ne.s32.totalorder %s92, %s94
      %p98 = scmp.eq.s32.totalorder %s16, 0
      %p99 = por %p97, %p98
      %p100 = scmp.ne.s32.totalorder %s92, %s94
      %p101 = scmp.eq.s32.totalorder %s21, 1
      %p102 = por %p100, %p101
      %p103 = scmp.ne.s32.totalorder %s94, %s95
      %p104 = scmp.eq.s32.totalorder %s21, 0
      %p105 = por %p103, %p104
      %p106 = scmp.ne.s32.totalorder %s94, %s95
      %p107 = scmp.eq.s32.totalorder %s22, 1
      %p108 = por %p106, %p107
      %p110 = scmp.ne.s32.totalorder %s95, %s109
      %p111 = scmp.eq.s32.totalorder %s22, 0
      %p112 = por %p110, %p111
      %s114 = sadd.s32 %s113, 1
      %p117 = scmp.eq.s32.totalorder %s16, 1
      %p118 = scmp.ne.s32.totalorder %s113, %s115
      %p119 = scmp.eq.s32.totalorder %s16, 0
      %p120 = por %p118, %p119
      %p121 = scmp.ne.s32.totalorder %s113, %s115
      %p122 = scmp.eq.s32.totalorder %s21, 1
      %p123 = por %p121, %p122
      %p124 = scmp.ne.s32.totalorder %s115, %s116
      %p125 = scmp.eq.s32.totalorder %s21, 0
      %p126 = por %p124, %p125
      %p127 = scmp.ne.s32.totalorder %s115, %s116
      %p128 = scmp.eq.s32.totalorder %s22, 1
      %p129 = por %p127, %p128
      %p131 = scmp.ne.s32.totalorder %s116, %s130
      %p132 = scmp.eq.s32.totalorder %s22, 0
      %p133 = por %p131, %p132
      %s135 = sadd.s32 %s134, 1
      %p138 = scmp.eq.s32.totalorder %s16, 1
      %p139 = scmp.ne.s32.totalorder %s134, %s136
      %p140 = scmp.eq.s32.totalorder %s16, 0
      %p141 = por %p139, %p140
      %p142 = scmp.ne.s32.totalorder %s134, %s136
      %p143 = scmp.eq.s32.totalorder %s21, 1
      %p144 = por %p142, %p143
      %p145 = scmp.ne.s32.totalorder %s136, %s137
      %p146 = scmp.eq.s32.totalorder %s21, 0
      %p147 = por %p145, %p146
      %p148 = scmp.ne.s32.totalorder %s136, %s137
      %p149 = scmp.eq.s32.totalorder %s22, 1
      %p150 = por %p148, %p149
      %p152 = scmp.ne.s32.totalorder %s137, %s151
      %p153 = scmp.eq.s32.totalorder %s22, 0
      %p154 = por %p152, %p153
      %s156 = sadd.s32 %s155, 1
      %p159 = scmp.eq.s32.totalorder %s16, 1
      %p160 = scmp.ne.s32.totalorder %s155, %s157
      %p161 = scmp.eq.s32.totalorder %s16, 0
      %p162 = por %p160, %p161
      %p163 = scmp.ne.s32.totalorder %s155, %s157
      %p164 = scmp.eq.s32.totalorder %s21, 1
      %p165 = por %p163, %p164
      %p166 = scmp.ne.s32.totalorder %s157, %s158
      %p167 = scmp.eq.s32.totalorder %s21, 0
      %p168 = por %p166, %p167
      %p169 = scmp.ne.s32.totalorder %s157, %s158
      %p170 = scmp.eq.s32.totalorder %s22, 1
      %p171 = por %p169, %p170
      %p173 = scmp.ne.s32.totalorder %s158, %s172
      %p174 = scmp.eq.s32.totalorder %s22, 0
      %p175 = por %p173, %p174
      %s176 = ssub.s32 %s16, %s23
      %p177 = scmp.eq.s32.totalorder %s176, 0
      %s179 = sadd.s32 %s178, 1
      %s180 = scalar_select %p177, %s178, %s179
      %p183 = pneg %p177
      %p184 = scmp.eq.s32.totalorder %s16, 1
      %p185 = por %p183, %p184
      %p186 = scmp.ne.s32.totalorder %s178, %s181
      %p187 = scmp.eq.s32.totalorder %s16, 0
      %p188 = por %p186, %p187
      %p189 = scmp.ne.s32.totalorder %s178, %s181
      %p190 = scmp.eq.s32.totalorder %s21, 1
      %p191 = por %p189, %p190
      %p192 = scmp.ne.s32.totalorder %s181, %s182
      %p193 = scmp.eq.s32.totalorder %s21, 0
      %p194 = por %p192, %p193
      %p195 = scmp.ne.s32.totalorder %s181, %s182
      %p196 = scmp.eq.s32.totalorder %s22, 1
      %p197 = por %p195, %p196
      %p199 = scmp.ne.s32.totalorder %s182, %s198
      %p200 = scmp.eq.s32.totalorder %s22, 0
      %p201 = por %p199, %p200
      %p202 = scmp.le.s32.totalorder 1, %s16
      %p203 = scmp.lt.s32.totalorder %s16, 3
      %p204 = pnand %p202, %p203
      %p205 = pneg %p204
      // Predicated region
      $region9: #{tpu_custom_call.1} parent=5 // pred_check
        _
      $region10: #{tpu_custom_call.1} parent=5 // pred_check_branch
        %207 = sbr.rel (%p204) target = $region12
      $region11: #{tpu_custom_call.1} parent=5 // pred_region
        %s208 = ssub.s32 %s16, 1
        // Predicated region
        $region13: #{tpu_custom_call.1} parent=11 // pred_check
          %p209 = pneg %p63
        $region14: #{tpu_custom_call.1} parent=11 // pred_check_branch
          %211 = sbr.rel (%p209) target = $region16
        $region15: #{tpu_custom_call.1} parent=11 // pred_region
          _
        $region16: #{tpu_custom_call.1} parent=11 // pred_fallthru
          _
        // Predicated region
        $region17: #{tpu_custom_call.1} parent=11 // pred_check
          %p212 = pneg %p84
        $region18: #{tpu_custom_call.1} parent=11 // pred_check_branch
          %214 = sbr.rel (%p212) target = $region20
        $region19: #{tpu_custom_call.1} parent=11 // pred_region
          _
        $region20: #{tpu_custom_call.1} parent=11 // pred_fallthru
          _
        // Predicated region
        $region21: #{tpu_custom_call.1} parent=11 // pred_check
          %p215 = pneg %p105
        $region22: #{tpu_custom_call.1} parent=11 // pred_check_branch
          %217 = sbr.rel (%p215) target = $region24
        $region23: #{tpu_custom_call.1} parent=11 // pred_region
          _
        $region24: #{tpu_custom_call.1} parent=11 // pred_fallthru
          _
        // Predicated region
        $region25: #{tpu_custom_call.1} parent=11 // pred_check
          %p218 = pneg %p126
        $region26: #{tpu_custom_call.1} parent=11 // pred_check_branch
          %220 = sbr.rel (%p218) target = $region28
        $region27: #{tpu_custom_call.1} parent=11 // pred_region
          _
        $region28: #{tpu_custom_call.1} parent=11 // pred_fallthru
          _
        // Predicated region
        $region29: #{tpu_custom_call.1} parent=11 // pred_check
          %p221 = pneg %p147
        $region30: #{tpu_custom_call.1} parent=11 // pred_check_branch
          %223 = sbr.rel (%p221) target = $region32
        $region31: #{tpu_custom_call.1} parent=11 // pred_region
          _
        $region32: #{tpu_custom_call.1} parent=11 // pred_fallthru
          _
        // Predicated region
        $region33: #{tpu_custom_call.1} parent=11 // pred_check
          %p224 = pneg %p168
        $region34: #{tpu_custom_call.1} parent=11 // pred_check_branch
          %226 = sbr.rel (%p224) target = $region36
        $region35: #{tpu_custom_call.1} parent=11 // pred_region
          _
        $region36: #{tpu_custom_call.1} parent=11 // pred_fallthru
          _
      $region12: #{tpu_custom_call.1} parent=5 // pred_fallthru
        _
      %p227 = scmp.lt.s32.totalorder %s16, 2
      // Predicated region
      $region37: #{tpu_custom_call.1} parent=5 // pred_check
        %p228 = pneg %p227
      $region38: #{tpu_custom_call.1} parent=5 // pred_check_branch
        %230 = sbr.rel (%p228) target = $region40
      $region39: #{tpu_custom_call.1} parent=5 // pred_region
        // Predicated region
        $region41: #{tpu_custom_call.1} parent=39 // pred_check
          %p231 = pneg %p36
        $region42: #{tpu_custom_call.1} parent=39 // pred_check_branch
          %233 = sbr.rel (%p231) target = $region44
        $region43: #{tpu_custom_call.1} parent=39 // pred_region
          %p234 = scmp.lt.s32.totalorder %s16, 1
          %s235 = scalar_select %p234, %s16, 1
          %s236 = smul.addr %s235, 8
          %s237 = scalar_lea.vmem %s0, %s236
        $region44: #{tpu_custom_call.1} parent=39 // pred_fallthru
          _
      $region40: #{tpu_custom_call.1} parent=5 // pred_fallthru
        _
      %p238 = scmp.le.s32.totalorder 1, %s16
      %p239 = scmp.lt.s32.totalorder %s16, 3
      %p240 = pnand %p238, %p239
      %p241 = pneg %p240
      // Predicated region
      $region45: #{tpu_custom_call.1} parent=5 // pred_check
        _
      $region46: #{tpu_custom_call.1} parent=5 // pred_check_branch
        %243 = sbr.rel (%p240) target = $region48
      $region47: #{tpu_custom_call.1} parent=5 // pred_region
        %s244 = ssub.s32 %s16, 1
        %p245 = scmp.lt.s32.totalorder %s21, 1
        %s246 = scalar_select %p245, %s21, 1
        %s247 = smul.addr %s246, 8
        %s248 = scalar_lea.vmem %s0, %s247
        %p249 = pneg %p42
        %p250 = pneg %p39
        %p251 = pneg %p63
        %p252 = pneg %p60
        %p253 = pneg %p84
        %p254 = pneg %p81
        %p255 = pneg %p105
        %p256 = pneg %p102
        %p257 = pneg %p126
        %p258 = pneg %p123
        %p259 = pneg %p147
        %p260 = pneg %p144
        %p261 = pneg %p168
        %p262 = pneg %p165
        %p263 = pneg %p194
        %p264 = pneg %p191
        %s265 = sand.u32 %s181, 1
        %s266 = scalar_lea.sflag [#allocation3], %s265
        %s267 = sand.u32 %s181, 1
        %s268 = smul.addr %s267, 8
        %s269 = scalar_lea.vmem [#allocation2], %s268
        %p270 = scmp.lt.s32.totalorder %s21, 1
        %s271 = scalar_select %p270, %s21, 1
        %s272 = smul.addr %s271, 8
        %s273 = scalar_lea.vmem %s0, %s272
        %v274 = vld [vmem:[%s273] sm:$0xff]
        %vm275 = vcmask 261120
        %v276 = vsel %vm275, %v274, 0.0
        %277 = vadd.xlane.f32.xlu0 %v276
        %v278 = vpop.xlane.xlu0 %277
        %v279 = vrcp.pop 32.0
        %v280 = vmul.f32 32.0, %v279
        %v281 = vsub.f32 1.0, %v280
        %v282 = vmul.f32 %v279, %v281
        %v283 = vadd.f32 %v279, %v282
        %vm284 = vweird.f32 %v279
        %v285 = vsel %vm284, %v279, %v283
        %v286 = vmul.f32 %v278, %v285
        %v287 = vsub.f32 %v274, %v286
        %v288 = vmul.f32 %v287, %v287
        %v289 = vsel %vm275, %v288, 0.0
        %290 = vadd.xlane.f32.xlu0 %v289
        %v291 = vpop.xlane.xlu0 %290
        %v292 = vrcp.pop 31.0
        %v293 = vmul.f32 31.0, %v292
        %v294 = vsub.f32 1.0, %v293
        %v295 = vmul.f32 %v292, %v294
        %v296 = vadd.f32 %v292, %v295
        %vm297 = vweird.f32 %v292
        %v298 = vsel %vm297, %v292, %v296
        %v299 = vmul.f32 %v291, %v298
        %v300 = vrsqrt.pop %v299
        %v301 = vmul.f32 %v300, %v299
        %v302 = vmul.f32 %v301, %v300
        %v303 = vmul.f32 0.5, %v302
        %v304 = vsub.f32 1.5, %v303
        %v305 = vmul.f32 %v300, %v304
        %v306 = vmul.f32 %v299, %v305
        %vm307 = vcmp.eq.f32.partialorder %v299, inf
        %v308 = vsel %vm307, %v299, %v306
        %vm309 = vcmp.eq.f32.partialorder %v299, 0.0
        %v310 = vand.u32 %v299, 2147483648
        %v311 = vsel %vm309, %v310, %v308
        %v312 = vadd.f32 %v311, 1e-06
        %v313 = vrcp.pop %v312
        %v314 = vmul.f32 %v312, %v313
        %v315 = vsub.f32 1.0, %v314
        %v316 = vmul.f32 %v313, %v315
        %v317 = vadd.f32 %v313, %v316
        %vm318 = vweird.f32 %v312
        %vm319 = vweird.f32 %v313
        %vm320 = vmor %vm318, %vm319
        %v321 = vsel %vm320, %v313, %v317
        %v322 = vand.u32 2147483647, %v312
        %vm323 = vcmp.eq.f32.partialorder %v322, 8.507059e+37
        %v324 = vand.u32 %v312, 2147483648
        %v325 = vor.u32 1.1754944e-38, %v324
        %v326 = vsel %vm323, %v325, %v321
        %v327 = vld [vmem:[%s1] sm:$0x1]
        %v329 = vperm.slane %v327, 0
        %v331 = vmul.f32 %v329, %v287
        %v332 = vmul.f32 %v331, %v326
        %v333 = vld [vmem:[%s2] sm:$0x1]
        %v335 = vperm.slane %v333, 0
        %v337 = vadd.f32 %v332, %v335
        %v338 = vld [vmem:[%s3] sm:$0xff]
        %v339 = vld [vmem:[%s3 + $0x8] sm:$0xff]
        %v340 = vld [vmem:[%s3 + $0x10] sm:$0xff]
        %v341 = vld [vmem:[%s3 + $0x18] sm:$0xff]
        %v342 = vld [vmem:[%s4] sm:$0x1]
        %v344 = vperm.slane %v342, 0
        %v347 = vsel %vm275, %v337, 0
        %349 = vmatpush.msra.mxu0 0.0
        %350 = vmatpush.msra.mxu0 0.0
        %351 = vmatpush.msra.mxu0 0.0
        %352 = vmatpush.msra.mxu0 0.0
        %353 = vmatpush.msra.mxu0 0.0
        %354 = vmatpush.msra.mxu0 0.0
        %355 = vmatpush.msra.mxu0 0.0
        %356 = vmatpush.msra.mxu0 0.0
        %357 = vmatpush.msra.mxu0 0.0
        %358 = vmatpush.msra.mxu0 0.0
        %359 = vmatpush.msra.mxu0 0.0
        %360 = vmatpush.msra.mxu0 0.0
        %v361 = vand.u32 %v341, 4294901760
        %362 = vmatpush.msra.mxu0 %v361
        %v363 = vand.u32 %v340, 4294901760
        %364 = vmatpush.msra.mxu0 %v363
        %v365 = vand.u32 %v339, 4294901760
        %366 = vmatpush.msra.mxu0 %v365
        %v367 = vand.u32 %v338, 4294901760
        %368 = vmatpush.msra.mxu0 %v367
        %v369 = vand.u32 %v347, 4294901760
        %v370 = vsub.f32 %v347, %v369
        %v371 = vand.u32 %v370, 4294901760
        %v372 = vsub.f32 %v370, %v371
        %v373 = vand.u32 %v372, 4294901760
        %374 = vmatmul.f32.gmra.mxu0 %v373
        %v375 = vpop.f32.mrf.mxu0
        %v376 = vadd.f32 %v344, %v375
        %377 = vdwg.mxu0
        %378 = vmatpush.msra.mxu0 0.0
        %379 = vmatpush.msra.mxu0 0.0
        %380 = vmatpush.msra.mxu0 0.0
        %381 = vmatpush.msra.mxu0 0.0
        %382 = vmatpush.msra.mxu0 0.0
        %383 = vmatpush.msra.mxu0 0.0
        %384 = vmatpush.msra.mxu0 0.0
        %385 = vmatpush.msra.mxu0 0.0
        %386 = vmatpush.msra.mxu0 0.0
        %387 = vmatpush.msra.mxu0 0.0
        %388 = vmatpush.msra.mxu0 0.0
        %389 = vmatpush.msra.mxu0 0.0
        %v390 = vand.u32 %v341, 4294901760
        %v391 = vsub.f32 %v341, %v390
        %v392 = vand.u32 %v391, 4294901760
        %v393 = vsub.f32 %v391, %v392
        %v394 = vand.u32 %v393, 4294901760
        %395 = vmatpush.msra.mxu0 %v394
        %v396 = vand.u32 %v340, 4294901760
        %v397 = vsub.f32 %v340, %v396
        %v398 = vand.u32 %v397, 4294901760
        %v399 = vsub.f32 %v397, %v398
        %v400 = vand.u32 %v399, 4294901760
        %401 = vmatpush.msra.mxu0 %v400
        %v402 = vand.u32 %v339, 4294901760
        %v403 = vsub.f32 %v339, %v402
        %v404 = vand.u32 %v403, 4294901760
        %v405 = vsub.f32 %v403, %v404
        %v406 = vand.u32 %v405, 4294901760
        %407 = vmatpush.msra.mxu0 %v406
        %v408 = vand.u32 %v338, 4294901760
        %v409 = vsub.f32 %v338, %v408
        %v410 = vand.u32 %v409, 4294901760
        %v411 = vsub.f32 %v409, %v410
        %v412 = vand.u32 %v411, 4294901760
        %413 = vmatpush.msra.mxu0 %v412
        %v414 = vand.u32 %v347, 4294901760
        %415 = vmatmul.f32.gmra.mxu0 %v414
        %v416 = vpop.f32.mrf.mxu0
        %v417 = vadd.f32 %v376, %v416
        %418 = vdwg.mxu0
        %419 = vmatpush.msra.mxu0 0.0
        %420 = vmatpush.msra.mxu0 0.0
        %421 = vmatpush.msra.mxu0 0.0
        %422 = vmatpush.msra.mxu0 0.0
        %423 = vmatpush.msra.mxu0 0.0
        %424 = vmatpush.msra.mxu0 0.0
        %425 = vmatpush.msra.mxu0 0.0
        %426 = vmatpush.msra.mxu0 0.0
        %427 = vmatpush.msra.mxu0 0.0
        %428 = vmatpush.msra.mxu0 0.0
        %429 = vmatpush.msra.mxu0 0.0
        %430 = vmatpush.msra.mxu0 0.0
        %v431 = vand.u32 %v341, 4294901760
        %v432 = vsub.f32 %v341, %v431
        %433 = vmatpush.msra.mxu0 %v432
        %v434 = vand.u32 %v340, 4294901760
        %v435 = vsub.f32 %v340, %v434
        %436 = vmatpush.msra.mxu0 %v435
        %v437 = vand.u32 %v339, 4294901760
        %v438 = vsub.f32 %v339, %v437
        %439 = vmatpush.msra.mxu0 %v438
        %v440 = vand.u32 %v338, 4294901760
        %v441 = vsub.f32 %v338, %v440
        %442 = vmatpush.msra.mxu0 %v441
        %v443 = vand.u32 %v347, 4294901760
        %v444 = vsub.f32 %v347, %v443
        %445 = vmatmul.f32.gmra.mxu0 %v444
        %v446 = vpop.f32.mrf.mxu0
        %v447 = vadd.f32 %v417, %v446
        %448 = vdwg.mxu0
        %449 = vmatpush.msra.mxu0 0.0
        %450 = vmatpush.msra.mxu0 0.0
        %451 = vmatpush.msra.mxu0 0.0
        %452 = vmatpush.msra.mxu0 0.0
        %453 = vmatpush.msra.mxu0 0.0
        %454 = vmatpush.msra.mxu0 0.0
        %455 = vmatpush.msra.mxu0 0.0
        %456 = vmatpush.msra.mxu0 0.0
        %457 = vmatpush.msra.mxu0 0.0
        %458 = vmatpush.msra.mxu0 0.0
        %459 = vmatpush.msra.mxu0 0.0
        %460 = vmatpush.msra.mxu0 0.0
        %v461 = vand.u32 %v341, 4294901760
        %462 = vmatpush.msra.mxu0 %v461
        %v463 = vand.u32 %v340, 4294901760
        %464 = vmatpush.msra.mxu0 %v463
        %v465 = vand.u32 %v339, 4294901760
        %466 = vmatpush.msra.mxu0 %v465
        %v467 = vand.u32 %v338, 4294901760
        %468 = vmatpush.msra.mxu0 %v467
        %v469 = vand.u32 %v347, 4294901760
        %v470 = vsub.f32 %v347, %v469
        %v471 = vand.u32 %v470, 4294901760
        %472 = vmatmul.f32.gmra.mxu0 %v471
        %v473 = vpop.f32.mrf.mxu0
        %v474 = vadd.f32 %v447, %v473
        %475 = vdwg.mxu0
        %476 = vmatpush.msra.mxu0 0.0
        %477 = vmatpush.msra.mxu0 0.0
        %478 = vmatpush.msra.mxu0 0.0
        %479 = vmatpush.msra.mxu0 0.0
        %480 = vmatpush.msra.mxu0 0.0
        %481 = vmatpush.msra.mxu0 0.0
        %482 = vmatpush.msra.mxu0 0.0
        %483 = vmatpush.msra.mxu0 0.0
        %484 = vmatpush.msra.mxu0 0.0
        %485 = vmatpush.msra.mxu0 0.0
        %486 = vmatpush.msra.mxu0 0.0
        %487 = vmatpush.msra.mxu0 0.0
        %v488 = vand.u32 %v341, 4294901760
        %v489 = vsub.f32 %v341, %v488
        %v490 = vand.u32 %v489, 4294901760
        %491 = vmatpush.msra.mxu0 %v490
        %v492 = vand.u32 %v340, 4294901760
        %v493 = vsub.f32 %v340, %v492
        %v494 = vand.u32 %v493, 4294901760
        %495 = vmatpush.msra.mxu0 %v494
        %v496 = vand.u32 %v339, 4294901760
        %v497 = vsub.f32 %v339, %v496
        %v498 = vand.u32 %v497, 4294901760
        %499 = vmatpush.msra.mxu0 %v498
        %v500 = vand.u32 %v338, 4294901760
        %v501 = vsub.f32 %v338, %v500
        %v502 = vand.u32 %v501, 4294901760
        %503 = vmatpush.msra.mxu0 %v502
        %v504 = vand.u32 %v347, 4294901760
        %505 = vmatmul.f32.gmra.mxu0 %v504
        %v506 = vpop.f32.mrf.mxu0
        %v507 = vadd.f32 %v474, %v506
        %508 = vdwg.mxu0
        %509 = vmatpush.msra.mxu0 0.0
        %510 = vmatpush.msra.mxu0 0.0
        %511 = vmatpush.msra.mxu0 0.0
        %512 = vmatpush.msra.mxu0 0.0
        %513 = vmatpush.msra.mxu0 0.0
        %514 = vmatpush.msra.mxu0 0.0
        %515 = vmatpush.msra.mxu0 0.0
        %516 = vmatpush.msra.mxu0 0.0
        %517 = vmatpush.msra.mxu0 0.0
        %518 = vmatpush.msra.mxu0 0.0
        %519 = vmatpush.msra.mxu0 0.0
        %520 = vmatpush.msra.mxu0 0.0
        %v521 = vand.u32 %v341, 4294901760
        %522 = vmatpush.msra.mxu0 %v521
        %v523 = vand.u32 %v340, 4294901760
        %524 = vmatpush.msra.mxu0 %v523
        %v525 = vand.u32 %v339, 4294901760
        %526 = vmatpush.msra.mxu0 %v525
        %v527 = vand.u32 %v338, 4294901760
        %528 = vmatpush.msra.mxu0 %v527
        %v529 = vand.u32 %v347, 4294901760
        %530 = vmatmul.f32.gmra.mxu0 %v529
        %v531 = vpop.f32.mrf.mxu0
        %v532 = vadd.f32 %v507, %v531
        %533 = vdwg.mxu0
        %v534 = vmul.f32 %v532, 0.2
        %v535 = vmax.f32 %v532, %v534
        %v536 = vld [vmem:[%s5] sm:$0xff]
        %v537 = vld [vmem:[%s5 + $0x8] sm:$0xff]
        %v538 = vld [vmem:[%s5 + $0x10] sm:$0xff]
        %v539 = vld [vmem:[%s5 + $0x18] sm:$0xff]
        %v540 = vld [vmem:[%s5 + $0x20] sm:$0xff]
        %v541 = vld [vmem:[%s5 + $0x28] sm:$0xff]
        %v542 = vld [vmem:[%s5 + $0x30] sm:$0xff]
        %v543 = vld [vmem:[%s5 + $0x38] sm:$0xff]
        %v544 = vld [vmem:[%s6] sm:$0x1]
        %v546 = vperm.slane %v544, 0
        %vm548 = vcmask 523264
        %v550 = vsel %vm548, %v535, 0
        %552 = vmatpush.msra.mxu0 0.0
        %553 = vmatpush.msra.mxu0 0.0
        %554 = vmatpush.msra.mxu0 0.0
        %555 = vmatpush.msra.mxu0 0.0
        %556 = vmatpush.msra.mxu0 0.0
        %557 = vmatpush.msra.mxu0 0.0
        %558 = vmatpush.msra.mxu0 0.0
        %559 = vmatpush.msra.mxu0 0.0
        %v560 = vand.u32 %v543, 4294901760
        %561 = vmatpush.msra.mxu0 %v560
        %v562 = vand.u32 %v542, 4294901760
        %563 = vmatpush.msra.mxu0 %v562
        %v564 = vand.u32 %v541, 4294901760
        %565 = vmatpush.msra.mxu0 %v564
        %v566 = vand.u32 %v540, 4294901760
        %567 = vmatpush.msra.mxu0 %v566
        %v568 = vand.u32 %v539, 4294901760
        %569 = vmatpush.msra.mxu0 %v568
        %v570 = vand.u32 %v538, 4294901760
        %571 = vmatpush.msra.mxu0 %v570
        %v572 = vand.u32 %v537, 4294901760
        %573 = vmatpush.msra.mxu0 %v572
        %v574 = vand.u32 %v536, 4294901760
        %575 = vmatpush.msra.mxu0 %v574
        %v576 = vand.u32 %v550, 4294901760
        %v577 = vsub.f32 %v550, %v576
        %v578 = vand.u32 %v577, 4294901760
        %v579 = vsub.f32 %v577, %v578
        %v580 = vand.u32 %v579, 4294901760
        %581 = vmatmul.f32.gmra.mxu0 %v580
        %v582 = vpop.f32.mrf.mxu0
        %v583 = vadd.f32 %v546, %v582
        %584 = vdwg.mxu0
        %585 = vmatpush.msra.mxu0 0.0
        %586 = vmatpush.msra.mxu0 0.0
        %587 = vmatpush.msra.mxu0 0.0
        %588 = vmatpush.msra.mxu0 0.0
        %589 = vmatpush.msra.mxu0 0.0
        %590 = vmatpush.msra.mxu0 0.0
        %591 = vmatpush.msra.mxu0 0.0
        %592 = vmatpush.msra.mxu0 0.0
        %v593 = vand.u32 %v543, 4294901760
        %v594 = vsub.f32 %v543, %v593
        %v595 = vand.u32 %v594, 4294901760
        %v596 = vsub.f32 %v594, %v595
        %v597 = vand.u32 %v596, 4294901760
        %598 = vmatpush.msra.mxu0 %v597
        %v599 = vand.u32 %v542, 4294901760
        %v600 = vsub.f32 %v542, %v599
        %v601 = vand.u32 %v600, 4294901760
        %v602 = vsub.f32 %v600, %v601
        %v603 = vand.u32 %v602, 4294901760
        %604 = vmatpush.msra.mxu0 %v603
        %v605 = vand.u32 %v541, 4294901760
        %v606 = vsub.f32 %v541, %v605
        %v607 = vand.u32 %v606, 4294901760
        %v608 = vsub.f32 %v606, %v607
        %v609 = vand.u32 %v608, 4294901760
        %610 = vmatpush.msra.mxu0 %v609
        %v611 = vand.u32 %v540, 4294901760
        %v612 = vsub.f32 %v540, %v611
        %v613 = vand.u32 %v612, 4294901760
        %v614 = vsub.f32 %v612, %v613
        %v615 = vand.u32 %v614, 4294901760
        %616 = vmatpush.msra.mxu0 %v615
        %v617 = vand.u32 %v539, 4294901760
        %v618 = vsub.f32 %v539, %v617
        %v619 = vand.u32 %v618, 4294901760
        %v620 = vsub.f32 %v618, %v619
        %v621 = vand.u32 %v620, 4294901760
        %622 = vmatpush.msra.mxu0 %v621
        %v623 = vand.u32 %v538, 4294901760
        %v624 = vsub.f32 %v538, %v623
        %v625 = vand.u32 %v624, 4294901760
        %v626 = vsub.f32 %v624, %v625
        %v627 = vand.u32 %v626, 4294901760
        %628 = vmatpush.msra.mxu0 %v627
        %v629 = vand.u32 %v537, 4294901760
        %v630 = vsub.f32 %v537, %v629
        %v631 = vand.u32 %v630, 4294901760
        %v632 = vsub.f32 %v630, %v631
        %v633 = vand.u32 %v632, 4294901760
        %634 = vmatpush.msra.mxu0 %v633
        %v635 = vand.u32 %v536, 4294901760
        %v636 = vsub.f32 %v536, %v635
        %v637 = vand.u32 %v636, 4294901760
        %v638 = vsub.f32 %v636, %v637
        %v639 = vand.u32 %v638, 4294901760
        %640 = vmatpush.msra.mxu0 %v639
        %v641 = vand.u32 %v550, 4294901760
        %642 = vmatmul.f32.gmra.mxu0 %v641
        %v643 = vpop.f32.mrf.mxu0
        %v644 = vadd.f32 %v583, %v643
        %645 = vdwg.mxu0
        %646 = vmatpush.msra.mxu0 0.0
        %647 = vmatpush.msra.mxu0 0.0
        %648 = vmatpush.msra.mxu0 0.0
        %649 = vmatpush.msra.mxu0 0.0
        %650 = vmatpush.msra.mxu0 0.0
        %651 = vmatpush.msra.mxu0 0.0
        %652 = vmatpush.msra.mxu0 0.0
        %653 = vmatpush.msra.mxu0 0.0
        %v654 = vand.u32 %v543, 4294901760
        %v655 = vsub.f32 %v543, %v654
        %656 = vmatpush.msra.mxu0 %v655
        %v657 = vand.u32 %v542, 4294901760
        %v658 = vsub.f32 %v542, %v657
        %659 = vmatpush.msra.mxu0 %v658
        %v660 = vand.u32 %v541, 4294901760
        %v661 = vsub.f32 %v541, %v660
        %662 = vmatpush.msra.mxu0 %v661
        %v663 = vand.u32 %v540, 4294901760
        %v664 = vsub.f32 %v540, %v663
        %665 = vmatpush.msra.mxu0 %v664
        %v666 = vand.u32 %v539, 4294901760
        %v667 = vsub.f32 %v539, %v666
        %668 = vmatpush.msra.mxu0 %v667
        %v669 = vand.u32 %v538, 4294901760
        %v670 = vsub.f32 %v538, %v669
        %671 = vmatpush.msra.mxu0 %v670
        %v672 = vand.u32 %v537, 4294901760
        %v673 = vsub.f32 %v537, %v672
        %674 = vmatpush.msra.mxu0 %v673
        %v675 = vand.u32 %v536, 4294901760
        %v676 = vsub.f32 %v536, %v675
        %677 = vmatpush.msra.mxu0 %v676
        %v678 = vand.u32 %v550, 4294901760
        %v679 = vsub.f32 %v550, %v678
        %680 = vmatmul.f32.gmra.mxu0 %v679
        %v681 = vpop.f32.mrf.mxu0
        %v682 = vadd.f32 %v644, %v681
        %683 = vdwg.mxu0
        %684 = vmatpush.msra.mxu0 0.0
        %685 = vmatpush.msra.mxu0 0.0
        %686 = vmatpush.msra.mxu0 0.0
        %687 = vmatpush.msra.mxu0 0.0
        %688 = vmatpush.msra.mxu0 0.0
        %689 = vmatpush.msra.mxu0 0.0
        %690 = vmatpush.msra.mxu0 0.0
        %691 = vmatpush.msra.mxu0 0.0
        %v692 = vand.u32 %v543, 4294901760
        %693 = vmatpush.msra.mxu0 %v692
        %v694 = vand.u32 %v542, 4294901760
        %695 = vmatpush.msra.mxu0 %v694
        %v696 = vand.u32 %v541, 4294901760
        %697 = vmatpush.msra.mxu0 %v696
        %v698 = vand.u32 %v540, 4294901760
        %699 = vmatpush.msra.mxu0 %v698
        %v700 = vand.u32 %v539, 4294901760
        %701 = vmatpush.msra.mxu0 %v700
        %v702 = vand.u32 %v538, 4294901760
        %703 = vmatpush.msra.mxu0 %v702
        %v704 = vand.u32 %v537, 4294901760
        %705 = vmatpush.msra.mxu0 %v704
        %v706 = vand.u32 %v536, 4294901760
        %707 = vmatpush.msra.mxu0 %v706
        %v708 = vand.u32 %v550, 4294901760
        %v709 = vsub.f32 %v550, %v708
        %v710 = vand.u32 %v709, 4294901760
        %711 = vmatmul.f32.gmra.mxu0 %v710
        %v712 = vpop.f32.mrf.mxu0
        %v713 = vadd.f32 %v682, %v712
        %714 = vdwg.mxu0
        %715 = vmatpush.msra.mxu0 0.0
        %716 = vmatpush.msra.mxu0 0.0
        %717 = vmatpush.msra.mxu0 0.0
        %718 = vmatpush.msra.mxu0 0.0
        %719 = vmatpush.msra.mxu0 0.0
        %720 = vmatpush.msra.mxu0 0.0
        %721 = vmatpush.msra.mxu0 0.0
        %722 = vmatpush.msra.mxu0 0.0
        %v723 = vand.u32 %v543, 4294901760
        %v724 = vsub.f32 %v543, %v723
        %v725 = vand.u32 %v724, 4294901760
        %726 = vmatpush.msra.mxu0 %v725
        %v727 = vand.u32 %v542, 4294901760
        %v728 = vsub.f32 %v542, %v727
        %v729 = vand.u32 %v728, 4294901760
        %730 = vmatpush.msra.mxu0 %v729
        %v731 = vand.u32 %v541, 4294901760
        %v732 = vsub.f32 %v541, %v731
        %v733 = vand.u32 %v732, 4294901760
        %734 = vmatpush.msra.mxu0 %v733
        %v735 = vand.u32 %v540, 4294901760
        %v736 = vsub.f32 %v540, %v735
        %v737 = vand.u32 %v736, 4294901760
        %738 = vmatpush.msra.mxu0 %v737
        %v739 = vand.u32 %v539, 4294901760
        %v740 = vsub.f32 %v539, %v739
        %v741 = vand.u32 %v740, 4294901760
        %742 = vmatpush.msra.mxu0 %v741
        %v743 = vand.u32 %v538, 4294901760
        %v744 = vsub.f32 %v538, %v743
        %v745 = vand.u32 %v744, 4294901760
        %746 = vmatpush.msra.mxu0 %v745
        %v747 = vand.u32 %v537, 4294901760
        %v748 = vsub.f32 %v537, %v747
        %v749 = vand.u32 %v748, 4294901760
        %750 = vmatpush.msra.mxu0 %v749
        %v751 = vand.u32 %v536, 4294901760
        %v752 = vsub.f32 %v536, %v751
        %v753 = vand.u32 %v752, 4294901760
        %754 = vmatpush.msra.mxu0 %v753
        %v755 = vand.u32 %v550, 4294901760
        %756 = vmatmul.f32.gmra.mxu0 %v755
        %v757 = vpop.f32.mrf.mxu0
        %v758 = vadd.f32 %v713, %v757
        %759 = vdwg.mxu0
        %760 = vmatpush.msra.mxu0 0.0
        %761 = vmatpush.msra.mxu0 0.0
        %762 = vmatpush.msra.mxu0 0.0
        %763 = vmatpush.msra.mxu0 0.0
        %764 = vmatpush.msra.mxu0 0.0
        %765 = vmatpush.msra.mxu0 0.0
        %766 = vmatpush.msra.mxu0 0.0
        %767 = vmatpush.msra.mxu0 0.0
        %v768 = vand.u32 %v543, 4294901760
        %769 = vmatpush.msra.mxu0 %v768
        %v770 = vand.u32 %v542, 4294901760
        %771 = vmatpush.msra.mxu0 %v770
        %v772 = vand.u32 %v541, 4294901760
        %773 = vmatpush.msra.mxu0 %v772
        %v774 = vand.u32 %v540, 4294901760
        %775 = vmatpush.msra.mxu0 %v774
        %v776 = vand.u32 %v539, 4294901760
        %777 = vmatpush.msra.mxu0 %v776
        %v778 = vand.u32 %v538, 4294901760
        %779 = vmatpush.msra.mxu0 %v778
        %v780 = vand.u32 %v537, 4294901760
        %781 = vmatpush.msra.mxu0 %v780
        %v782 = vand.u32 %v536, 4294901760
        %783 = vmatpush.msra.mxu0 %v782
        %v784 = vand.u32 %v550, 4294901760
        %785 = vmatmul.f32.gmra.mxu0 %v784
        %v786 = vpop.f32.mrf.mxu0
        %v787 = vadd.f32 %v758, %v786
        %788 = vdwg.mxu0
        %v789 = vadd.f32 %v787, %v274
        %790 = vst.msk [vmem:[%s269] sm:$0xff] %vm275, %v789
        %s791 = sand.u32 %s181, 1
        %s792 = scalar_lea.sflag [#allocation3], %s791
        %s793 = sand.u32 %s181, 1
        %s794 = smul.addr %s793, 8
        %s795 = scalar_lea.vmem [#allocation2], %s794
        // Predicated region
        $region49: #{tpu_custom_call.1} parent=47 // pred_check
          %p796 = pneg %p191
        $region50: #{tpu_custom_call.1} parent=47 // pred_check_branch
          %798 = sbr.rel (%p796) target = $region52
        $region51: #{tpu_custom_call.1} parent=47 // pred_region
          %800 = vsyncadd %s792, 0
          %s801 = smul.addr %s21, 8
          %s802 = scalar_lea.hbm %s7, %s801
          %s804 = sshll.u32 %s795, 4
          %s805 = int_to_ptr.vmem [resolvable:$true] %s804
          %s806 = sshll.u32 %s802, 4
          %s807 = int_to_ptr.hbm [resolvable:$true] %s806
          %809 = dma.vmem_to_hbm [thread:$0]  %s805, 128, %s807, %s792
        $region52: #{tpu_custom_call.1} parent=47 // pred_fallthru
          _
      $region48: #{tpu_custom_call.1} parent=5 // pred_fallthru
        _
      %p810 = scmp.le.s32.totalorder 2, %s16
      // Predicated region
      $region53: #{tpu_custom_call.1} parent=5 // pred_check
        %p811 = pneg %p810
      $region54: #{tpu_custom_call.1} parent=5 // pred_check_branch
        %813 = sbr.rel (%p811) target = $region56
      $region55: #{tpu_custom_call.1} parent=5 // pred_region
        %s814 = ssub.s32 %s16, 2
        // Predicated region
        $region57: #{tpu_custom_call.1} parent=55 // pred_check
          %p815 = pneg %p197
        $region58: #{tpu_custom_call.1} parent=55 // pred_check_branch
          %817 = sbr.rel (%p815) target = $region60
        $region59: #{tpu_custom_call.1} parent=55 // pred_region
          %s818 = sand.u32 %s182, 1
          %s819 = scalar_lea.sflag [#allocation3], %s818
          %s820 = sand.u32 %s182, 1
          %s821 = smul.addr %s820, 8
          %s822 = scalar_lea.vmem [#allocation2], %s821
          %824 = dma.done %s819, 128
        $region60: #{tpu_custom_call.1} parent=55 // pred_fallthru
          _
      $region56: #{tpu_custom_call.1} parent=5 // pred_fallthru
        _
    $region6: #{tpu_custom_call.1} parent=1 // loop_footer
      %s20 = sadd.s32 1, %s16
    $region7: #{tpu_custom_call.1} parent=1 // loop_footer_branch
      %15 = sbr.rel target = $region3
    $region8: #{tpu_custom_call.1} parent=1 // loop_exit
      _
    %825 = vsyncpa [#allocation3], 1
    %s826 = scalar_lea.sflag [#allocation3], 1
    %827 = vsyncpa %s826, 1

</llo_original>
